<compile_context>
chip_gen: v6e
topology: v6e:2x2x1
jax: 0.10.0
libtpu: 0.0.40
codegen_flags: <defaults>
</compile_context>

<pallas_src>
import math

import jax
import jax.numpy as jnp
from jax import lax
from jax.experimental import pallas as pl
from jax.experimental.pallas import tpu as pltpu

_VMEM_LIMIT = 64 * 1024 * 1024  # explicit scoped-VMEM limit (default is 16/32 MiB on v5e/v6e)


def _largest_block(n, target, multiple):
    """Largest divisor of n that is <= target and a multiple of `multiple`; else n (one block)."""
    if n <= target:
        return n
    for b in range(target, multiple - 1, -1):
        if n % b == 0 and b % multiple == 0:
            return b
    return n


# ---------------------------------------------------------------------------
# Tiled linear kernels:  out = x @ W (+ b)   — f32 accumulation in VMEM scratch,
# grid (M//rb, N//tn, K//tk), K innermost / "arbitrary".
# ---------------------------------------------------------------------------
def _linear_bias_kernel(x_ref, w_ref, b_ref, o_ref, acc_ref):
    @pl.when(pl.program_id(2) == 0)
    def _init():
        acc_ref[...] = jnp.zeros_like(acc_ref)

    acc_ref[...] += jnp.dot(x_ref[...], w_ref[...], preferred_element_type=jnp.float32)

    @pl.when(pl.program_id(2) == pl.num_programs(2) - 1)
    def _finalize():
        o_ref[...] = (acc_ref[...] + b_ref[...].astype(jnp.float32)).astype(o_ref.dtype)


def _linear_nobias_kernel(x_ref, w_ref, o_ref, acc_ref):
    @pl.when(pl.program_id(2) == 0)
    def _init():
        acc_ref[...] = jnp.zeros_like(acc_ref)

    acc_ref[...] += jnp.dot(x_ref[...], w_ref[...], preferred_element_type=jnp.float32)

    @pl.when(pl.program_id(2) == pl.num_programs(2) - 1)
    def _finalize():
        o_ref[...] = acc_ref[...].astype(o_ref.dtype)


def _linear(x, w, b=None, *, out_dtype, sub_mult=8,
            rb_target=256, tn_target=512, tk_target=512):
    M, K = x.shape
    _, N = w.shape
    rb = _largest_block(M, rb_target, sub_mult)   # MXU M dimension (sublane)
    tn = _largest_block(N, tn_target, 128)        # lane dimension of W / out
    tk = _largest_block(K, tk_target, 128)        # contraction tile

    in_specs = [
        pl.BlockSpec((rb, tk), lambda i, j, k: (i, k)),
        pl.BlockSpec((tk, tn), lambda i, j, k: (k, j)),
    ]
    args = [x, w]
    if b is not None:
        in_specs.append(pl.BlockSpec((1, tn), lambda i, j, k: (0, j)))
        args.append(b)
        kernel = _linear_bias_kernel
    else:
        kernel = _linear_nobias_kernel

    # TODO(synk): on v7x an fp8 operand path (f32 accumulation) for the projections would roughly
    # double MXU throughput; not implemented here to keep numerics comparable to the reference.
    return pl.pallas_call(
        kernel,
        out_shape=jax.ShapeDtypeStruct((M, N), out_dtype),
        grid=(M // rb, N // tn, K // tk),
        in_specs=in_specs,
        out_specs=pl.BlockSpec((rb, tn), lambda i, j, k: (i, j)),
        scratch_shapes=[pltpu.VMEM((rb, tn), jnp.float32)],
        compiler_params=pltpu.CompilerParams(
            dimension_semantics=("parallel", "parallel", "arbitrary"),
            vmem_limit_bytes=_VMEM_LIMIT),
    )(*args)


# ---------------------------------------------------------------------------
# Flash attention kernel (causal, online softmax).
# q/k/v come from one packed array (3, B*H, T, hd); grid = (B*H, T//ts, T//ts),
# kv axis innermost / "arbitrary".  Scale 1/sqrt(hd) is pre-folded into W_q.
# ---------------------------------------------------------------------------
def _flash_kernel(q_ref, k_ref, v_ref, o_ref, m_sc, l_sc, acc_sc):
    qi = pl.program_id(1)
    ki = pl.program_id(2)
    nk = pl.num_programs(2)
    tq = q_ref.shape[0]
    tk = k_ref.shape[0]
    q_start = qi * tq
    k_start = ki * tk

    @pl.when(ki == 0)
    def _init():
        m_sc[...] = jnp.full(m_sc.shape, -jnp.inf, m_sc.dtype)
        l_sc[...] = jnp.zeros(l_sc.shape, l_sc.dtype)
        acc_sc[...] = jnp.zeros(acc_sc.shape, acc_sc.dtype)

    def _accumulate(apply_mask):
        q = q_ref[...]                           # (tq, hd)
        k = k_ref[...]                           # (tk, hd)
        v = v_ref[...]                           # (tk, hd)
        # q @ k.T on the MXU (contract head_dim with head_dim), f32 accumulation.
        s = lax.dot_general(q, k, (((1,), (1,)), ((), ())),
                            preferred_element_type=jnp.float32)              # (tq, tk)
        if apply_mask:
            rows = q_start + lax.broadcasted_iota(jnp.int32, (tq, tk), 0)
            cols = k_start + lax.broadcasted_iota(jnp.int32, (tq, tk), 1)
            # ki==0 always has >=1 unmasked column per row (diagonal), so m stays finite.
            s = jnp.where(cols > rows, -jnp.inf, s)
        m_prev = m_sc[...]
        m_new = jnp.maximum(m_prev, jnp.max(s, axis=-1, keepdims=True))
        alpha = jnp.exp(m_prev - m_new)
        p = jnp.exp(s - m_new)
        l_sc[...] = alpha * l_sc[...] + jnp.sum(p, axis=-1, keepdims=True)
        acc_sc[...] = alpha * acc_sc[...] + jnp.dot(p.astype(v.dtype), v,
                                                    preferred_element_type=jnp.float32)
        m_sc[...] = m_new

    # Interior tiles (entirely below the diagonal): no mask work generated at all.
    @pl.when(k_start + tk - 1 <= q_start)
    def _interior():
        _accumulate(apply_mask=False)

    # Diagonal tiles: iota + compare + where only here.  Tiles fully above the diagonal
    # fall in neither branch (compute skipped; their DMA is skipped via the clamped index_map).
    @pl.when(jnp.logical_and(k_start <= q_start + tq - 1, k_start + tk - 1 > q_start))
    def _diag():
        _accumulate(apply_mask=True)

    @pl.when(ki == nk - 1)
    def _finalize():
        # TODO(synk): nn.Dropout on attn_weights omitted (eval-mode identity).
        inv_l = pl.reciprocal(l_sc[...], approx=True)   # EUP slot; off the VALU critical path
        o_ref[...] = (acc_sc[...] * inv_l).astype(o_ref.dtype)


def _flash_attention(qkv_heads, *, seq_block=256, sub_mult=8):
    # qkv_heads: (3, B*H, T, hd) — axis 0 selects q / k / v.
    _, G, T, hd = qkv_heads.shape
    ts = _largest_block(T, seq_block, sub_mult)   # tq == tk
    nblk = T // ts

    def _kv_index(axis):
        def index(g, qi, ki):
            # Clamp the kv block to the last causally-needed block for this q block: tiles
            # entirely above the diagonal repeat the previous block index, so Pallas skips
            # their HBM->VMEM DMA (~50% of K/V bandwidth saved for causal attention).
            return (axis, g, jnp.minimum(ki, qi), 0)
        return index

    # TODO(synk): when head_dim is a multiple of 128 the head split/merge transposes can be
    # eliminated by indexing heads straight out of the (B, T, 3*d_out) layout; for hd < 128
    # that BlockSpec would violate the lane-tiling constraint, so the transpose path is kept.
    # TODO(synk): for hd < 128 packing 2 heads per grid step would make stores lane-dense.
    return pl.pallas_call(
        _flash_kernel,
        out_shape=jax.ShapeDtypeStruct((G, T, hd), qkv_heads.dtype),
        grid=(G, nblk, nblk),
        in_specs=[
            pl.BlockSpec((pl.Squeezed(), pl.Squeezed(), ts, hd),
                         lambda g, qi, ki: (0, g, qi, 0)),
            pl.BlockSpec((pl.Squeezed(), pl.Squeezed(), ts, hd), _kv_index(1)),
            pl.BlockSpec((pl.Squeezed(), pl.Squeezed(), ts, hd), _kv_index(2)),
        ],
        out_specs=pl.BlockSpec((pl.Squeezed(), ts, hd), lambda g, qi, ki: (g, qi, 0)),
        scratch_shapes=[
            pltpu.VMEM((ts, 1), jnp.float32),    # running max m
            pltpu.VMEM((ts, 1), jnp.float32),    # running denominator l
            pltpu.VMEM((ts, hd), jnp.float32),   # running numerator acc
        ],
        compiler_params=pltpu.CompilerParams(
            dimension_semantics=("parallel", "parallel", "arbitrary"),
            vmem_limit_bytes=_VMEM_LIMIT),
    )(qkv_heads, qkv_heads, qkv_heads)


# ---------------------------------------------------------------------------
# Parameter preparation (one-time) + forward pass.
# ---------------------------------------------------------------------------
def prepare_mha_params(w_q, w_k, w_v, w_o, b_o, *, num_heads, matmul_dtype=None):
    """One-time prep: fuse QKV weights, fold 1/sqrt(hd) into W_q, cast to matmul dtype."""
    d_in, d_out = w_q.shape
    assert d_out % num_heads == 0
    hd = d_out // num_heads
    dt = jnp.dtype(matmul_dtype) if matmul_dtype is not None else jnp.dtype(w_q.dtype)
    scale = 1.0 / math.sqrt(hd)
    w_qkv = jnp.concatenate([w_q * scale, w_k, w_v], axis=1).astype(dt)   # (d_in, 3*d_out)
    return {
        "w_qkv": w_qkv,
        "w_o": w_o.astype(dt),
        "b_o": b_o.reshape(1, d_out).astype(dt),
        "num_heads": num_heads,
        "dtype": dt,
    }


def multi_head_attention(x, params):
    w_qkv, w_o, b_o = params["w_qkv"], params["w_o"], params["b_o"]
    H = params["num_heads"]
    dt = params["dtype"]
    B, T, d_in = x.shape
    d_out = w_o.shape[1]
    hd = d_out // H
    out_dtype = x.dtype
    sub_mult = 16 if dt == jnp.dtype(jnp.bfloat16) else 8   # bf16 (16,128) sublane tiling

    # 1) Fused QKV projection (qkv_bias=False): one wide tiled matmul, batch merged into M.
    x2 = x.reshape(B * T, d_in).astype(dt)
    qkv = _linear(x2, w_qkv, None, out_dtype=dt, sub_mult=sub_mult)         # (B*T, 3*d_out)

    # Head split: single reshape/transpose of the packed QKV -> (3, B*H, T, hd).
    qkv_heads = (qkv.reshape(B, T, 3, H, hd)
                    .transpose(2, 0, 3, 1, 4)
                    .reshape(3, B * H, T, hd))

    # 2) Causal flash attention over all (batch, head) pairs in parallel grid axes.
    ctx = _flash_attention(qkv_heads, sub_mult=sub_mult)                    # (B*H, T, hd)

    # Head merge (== contiguous().view in the PyTorch module): (B*H, T, hd) -> (B*T, d_out).
    ctx2 = (ctx.reshape(B, H, T, hd)
               .transpose(0, 2, 1, 3)
               .reshape(B * T, d_out)).astype(dt)

    # 3) Output projection with bias.
    out = _linear(ctx2, w_o, b_o, out_dtype=out_dtype, sub_mult=sub_mult)
    return out.reshape(B, T, d_out)


def mha_reference(x, w_q, w_k, w_v, w_o, b_o, *, num_heads):
    """Plain-JAX replica of the PyTorch forward (eval mode) for verification."""
    B, T, d_in = x.shape
    d_out = w_q.shape[1]
    hd = d_out // num_heads
    q = (x @ w_q).reshape(B, T, num_heads, hd).transpose(0, 2, 1, 3)
    k = (x @ w_k).reshape(B, T, num_heads, hd).transpose(0, 2, 1, 3)
    v = (x @ w_v).reshape(B, T, num_heads, hd).transpose(0, 2, 1, 3)
    s = jnp.einsum("bhtd,bhsd->bhts", q, k)
    mask = jnp.triu(jnp.ones((T, T), bool), k=1)
    s = jnp.where(mask, -jnp.inf, s)
    w = jax.nn.softmax(s / hd ** 0.5, axis=-1)
    ctx = jnp.einsum("bhts,bhsd->bhtd", w, v).transpose(0, 2, 1, 3).reshape(B, T, d_out)
    return ctx @ w_o + b_o


if __name__ == "__main__":
    B, T, d_in, d_out, num_heads = 2, 8, 32, 32, 4

    key = jax.random.PRNGKey(0)
    kx, kq, kk, kv, ko, kb = jax.random.split(key, 6)
    x = jax.random.normal(kx, (B, T, d_in), jnp.float32)
    # nn.Linear weights stored pre-transposed as (in, out); qkv_bias=False, out_proj has bias.
    w_q = jax.random.normal(kq, (d_in, d_out), jnp.float32) * 0.1
    w_k = jax.random.normal(kk, (d_in, d_out), jnp.float32) * 0.1
    w_v = jax.random.normal(kv, (d_in, d_out), jnp.float32) * 0.1
    w_o = jax.random.normal(ko, (d_out, d_out), jnp.float32) * 0.1
    b_o = jax.random.normal(kb, (d_out,), jnp.float32) * 0.1

    ref = mha_reference(x, w_q, w_k, w_v, w_o, b_o, num_heads=num_heads)

    # f32 path (tolerance loosened slightly for the approximate EUP reciprocal in the epilogue).
    params_f32 = prepare_mha_params(w_q, w_k, w_v, w_o, b_o, num_heads=num_heads)
    out = multi_head_attention(x, params_f32)
    out = jax.block_until_ready(out)
    assert out.shape == (B, T, d_out)
    assert jnp.allclose(out, ref, atol=2e-3, rtol=2e-3), "f32 mismatch vs reference"

    # bf16 MXU operands / f32 accumulation (v6e/v7x recommendation); loose tolerance vs f32 ref.
    params_bf16 = prepare_mha_params(w_q, w_k, w_v, w_o, b_o, num_heads=num_heads,
                                     matmul_dtype=jnp.bfloat16)
    out_bf16 = multi_head_attention(x, params_bf16)
    out_bf16 = jax.block_until_ready(out_bf16)
    assert jnp.allclose(out_bf16, ref, atol=5e-2, rtol=5e-2), "bf16 mismatch vs reference"

    print("KERNEL_OK")
</pallas_src>

<mosaic_0001>
module attributes {stable_mosaic.version = 11 : i64} {
  func.func @_linear_nobias_kernel(%arg0: i32, %arg1: i32, %arg2: i32, %arg3: memref<16x32xf32, #tpu.memory_space<vmem>>, %arg4: memref<32x96xf32, #tpu.memory_space<vmem>>, %arg5: memref<16x96xf32, #tpu.memory_space<vmem>>, %arg6: memref<16x96xf32, #tpu.memory_space<vmem>>) attributes {dimension_semantics = [#tpu.dimension_semantics<parallel>, #tpu.dimension_semantics<parallel>, #tpu.dimension_semantics<arbitrary>], iteration_bounds = array<i64: 1, 1, 1>, scalar_prefetch = 0 : i64, scratch_operands = 1 : i64, tpu.core_type = #tpu.core_type<tc>, window_params = [{transform_indices = @transform_0, window_bounds = array<i64: 16, 32>}, {transform_indices = @transform_1, window_bounds = array<i64: 32, 96>}, {transform_indices = @transform_2, window_bounds = array<i64: 16, 96>}]} {
    %c0_i32 = arith.constant 0 : i32
    %0 = arith.cmpi eq, %arg2, %c0_i32 : i32
    %1 = arith.extui %0 : i1 to i32
    %c0_i32_0 = arith.constant 0 : i32
    %2 = arith.cmpi ne, %1, %c0_i32_0 : i32
    scf.if %2 {
      %cst_10 = arith.constant 0.000000e+00 : f32
      %12 = vector.broadcast %cst_10 : f32 to vector<16x96xf32>
      %c0_11 = arith.constant 0 : index
      %c0_12 = arith.constant 0 : index
      %13 = vector.load %arg6[%c0_11, %c0_12] : memref<16x96xf32, #tpu.memory_space<vmem>>, vector<16x96xf32>
      tpu.vector_store %arg6[%c0_11, %c0_12], %12 {strides = array<i32>} : memref<16x96xf32, #tpu.memory_space<vmem>>, vector<16x96xf32>,
    } else {
    }
    %c0 = arith.constant 0 : index
    %c0_1 = arith.constant 0 : index
    %3 = vector.load %arg6[%c0, %c0_1] : memref<16x96xf32, #tpu.memory_space<vmem>>, vector<16x96xf32>
    %c0_2 = arith.constant 0 : index
    %c0_3 = arith.constant 0 : index
    %4 = vector.load %arg3[%c0_2, %c0_3] : memref<16x32xf32, #tpu.memory_space<vmem>>, vector<16x32xf32>
    %c0_4 = arith.constant 0 : index
    %c0_5 = arith.constant 0 : index
    %5 = vector.load %arg4[%c0_4, %c0_5] : memref<32x96xf32, #tpu.memory_space<vmem>>, vector<32x96xf32>
    %cst = arith.constant dense<0.000000e+00> : vector<16x96xf32>
    %6 = tpu.matmul %4, %5, %cst {dimension_numbers = #tpu.dot_dimension_numbers<[1], [0], [0], [1], [0, 0, 1, 1], [], []>} : vector<16x32xf32>, vector<32x96xf32>, vector<16x96xf32> -> vector<16x96xf32>
    %7 = arith.addf %3, %6 : vector<16x96xf32>
    %c0_6 = arith.constant 0 : index
    %c0_7 = arith.constant 0 : index
    %8 = vector.load %arg6[%c0_6, %c0_7] : memref<16x96xf32, #tpu.memory_space<vmem>>, vector<16x96xf32>
    tpu.vector_store %arg6[%c0_6, %c0_7], %7 {strides = array<i32>} : memref<16x96xf32, #tpu.memory_space<vmem>>, vector<16x96xf32>,
    %c0_i32_8 = arith.constant 0 : i32
    %9 = arith.cmpi eq, %arg2, %c0_i32_8 : i32
    %10 = arith.extui %9 : i1 to i32
    %c0_i32_9 = arith.constant 0 : i32
    %11 = arith.cmpi ne, %10, %c0_i32_9 : i32
    scf.if %11 {
      %c0_10 = arith.constant 0 : index
      %c0_11 = arith.constant 0 : index
      %12 = vector.load %arg6[%c0_10, %c0_11] : memref<16x96xf32, #tpu.memory_space<vmem>>, vector<16x96xf32>
      %c0_12 = arith.constant 0 : index
      %c0_13 = arith.constant 0 : index
      %13 = vector.load %arg5[%c0_12, %c0_13] : memref<16x96xf32, #tpu.memory_space<vmem>>, vector<16x96xf32>
      tpu.vector_store %arg5[%c0_12, %c0_13], %12 {strides = array<i32>} : memref<16x96xf32, #tpu.memory_space<vmem>>, vector<16x96xf32>,
    } else {
    }
    return
  }
  func.func @transform_0(%arg0: i32, %arg1: i32, %arg2: i32) -> (i32, i32) {
    %c0_i32 = arith.constant 0 : i32
    return %arg0, %arg2 : i32, i32
  }
  func.func @transform_1(%arg0: i32, %arg1: i32, %arg2: i32) -> (i32, i32) {
    %c0_i32 = arith.constant 0 : i32
    return %arg2, %arg1 : i32, i32
  }
  func.func @transform_2(%arg0: i32, %arg1: i32, %arg2: i32) -> (i32, i32) {
    %c0_i32 = arith.constant 0 : i32
    return %arg0, %arg1 : i32, i32
  }
}

</mosaic_0001>

<llo_original>
// kernel: tpu_custom_call.1
$region0: #{tpu_custom_call.1}
  #allocation0 [shape = 'u32[]', space=smem, size = 0x4, offset = 0x4, fixed_abs, tag = 'smem constant byte address 0x4 - core index']
  #allocation1 [shape = 'u32[144,128]{1,0:T(1,128)}', space=vmem, size = 0x12000, scoped, tag = 'internal scratch']
  #allocation2 [shape = 'f32[16,96]{1,0:T(8,128)}', space=vmem, size = 0x2000, scoped, tag = 'scratch operand']
  %s0 = inlined_call_operand.hbm [shape: f32[16,32], index: 0, kind: input, shape index: {}]
  %s1 = inlined_call_operand.hbm [shape: f32[32,96], index: 1, kind: input, shape index: {}]
  %s2 = inlined_call_operand.hbm [shape: f32[16,96], index: 2, kind: output, shape index: {}]
  %s3 = sld [smem:[#allocation0]]
  $region34: #{tpu_custom_call.1} parent=0
    _
  %s5 = ssub.s32 1, %s3
  %s6 = scalar_select 0, %s5, %s3
  $region1: #{tpu_custom_call.1} parent=0
    #allocation3 [shape = 'u8[8192]{0}', space=vmem, size = 0x2000, scoped, tag = 'input window, operand 0, single buffered']
    #allocation4 [shape = 's32[1]{0}', space=sflag, size = 0x4, scoped, tag = 'scoped memory for tpu_custom_call.1']
    #allocation5 [shape = 's32[1]{0}', space=sflag, size = 0x4, scoped, tag = 'scoped memory for tpu_custom_call.1']
    #allocation6 [shape = 'u8[16384]{0}', space=vmem, size = 0x4000, scoped, tag = 'input window, operand 1, single buffered']
    #allocation7 [shape = 's32[1]{0}', space=sflag, size = 0x4, scoped, tag = 'scoped memory for tpu_custom_call.1']
    #allocation8 [shape = 'u8[8192]{0}', space=vmem, size = 0x2000, scoped, tag = 'output window, operand 0, single buffered']
    %7 = vsyncpa [#allocation4], 0
    %8 = vsyncpa [#allocation7], 0
    %9 = vsyncpa [#allocation5], 0
    // Predicated region
    $region2: #{tpu_custom_call.1} parent=1 // pred_check
      _
    $region3: #{tpu_custom_call.1} parent=1 // pred_check_branch
      %11 = sbr.rel (0) target = $region5
    $region4: #{tpu_custom_call.1} parent=1 // pred_region
      %s13 = ssub.s32 256, 256
      %14 = vsyncadd [#allocation4], %s13
      %s15 = sshll.u32 [#allocation3], 4
      %s16 = int_to_ptr.vmem [resolvable:$true] %s15
      %21 = dma.hbm_to_vmem [thread:$0]  %s0, 256, %s16, [#allocation4], 128, 128, 8
    $region5: #{tpu_custom_call.1} parent=1 // pred_fallthru
      _
    // Predicated region
    $region6: #{tpu_custom_call.1} parent=1 // pred_check
      _
    $region7: #{tpu_custom_call.1} parent=1 // pred_check_branch
      %23 = sbr.rel (0) target = $region9
    $region8: #{tpu_custom_call.1} parent=1 // pred_region
      %s25 = ssub.s32 512, 512
      %26 = vsyncadd [#allocation7], %s25
      %s27 = sshll.u32 [#allocation6], 4
      %s28 = int_to_ptr.vmem [resolvable:$true] %s27
      %33 = dma.hbm_to_vmem [thread:$0]  %s1, 512, %s28, [#allocation7], 128, 128, 8
    $region9: #{tpu_custom_call.1} parent=1 // pred_fallthru
      _
    // Predicated region
    $region10: #{tpu_custom_call.1} parent=1 // pred_check
      _
    $region11: #{tpu_custom_call.1} parent=1 // pred_check_branch
      %35 = sbr.rel (0) target = $region13
    $region12: #{tpu_custom_call.1} parent=1 // pred_region
      %36 = dma.done [#allocation4], 256
    $region13: #{tpu_custom_call.1} parent=1 // pred_fallthru
      _
    // Predicated region
    $region14: #{tpu_custom_call.1} parent=1 // pred_check
      _
    $region15: #{tpu_custom_call.1} parent=1 // pred_check_branch
      %38 = sbr.rel (0) target = $region17
    $region16: #{tpu_custom_call.1} parent=1 // pred_region
      %39 = dma.done [#allocation7], 512
    $region17: #{tpu_custom_call.1} parent=1 // pred_fallthru
      _
    %p40 = scmp.eq.s32.totalorder 0, 0
    // Predicated region
    $region18: #{tpu_custom_call.1} parent=1 // pred_check
      %p41 = pneg %p40
    $region19: #{tpu_custom_call.1} parent=1 // pred_check_branch
      %43 = sbr.rel (%p41) target = $region21
    $region20: #{tpu_custom_call.1} parent=1 // pred_region
      %vm44 = vcmask 785408
      %45 = vst.msk [vmem:[#allocation2] sm:$0xff] %vm44, 0.0
      %46 = vst.msk [vmem:[#allocation2 + $0x8] sm:$0xff] %vm44, 0.0
    $region21: #{tpu_custom_call.1} parent=1 // pred_fallthru
      _
    %v47 = vld [vmem:[#allocation2] sm:$0xff]
    %v48 = vld [vmem:[#allocation2 + $0x8] sm:$0xff]
    %v49 = vld [vmem:[#allocation3] sm:$0xff]
    %v50 = vld [vmem:[#allocation3 + $0x8] sm:$0xff]
    %v51 = vld [vmem:[#allocation6] sm:$0xff]
    %v52 = vld [vmem:[#allocation6 + $0x8] sm:$0xff]
    %v53 = vld [vmem:[#allocation6 + $0x10] sm:$0xff]
    %v54 = vld [vmem:[#allocation6 + $0x18] sm:$0xff]
    %vm55 = vcmask 261120
    %v57 = vsel %vm55, %v49, 0
    %v60 = vsel %vm55, %v50, 0
    %62 = vmatprep.subr.mxu0 0.0
    %63 = vmatpush1.msra.mxu0 0.0
    %64 = vmatprep.subr.mxu0 0.0
    %65 = vmatpush1.msra.mxu0 0.0
    %66 = vmatprep.subr.mxu0 0.0
    %67 = vmatpush1.msra.mxu0 0.0
    %68 = vmatprep.subr.mxu0 0.0
    %69 = vmatpush1.msra.mxu0 0.0
    %70 = vmatprep.subr.mxu0 0.0
    %71 = vmatpush1.msra.mxu0 0.0
    %72 = vmatprep.subr.mxu0 0.0
    %73 = vmatpush1.msra.mxu0 0.0
    %74 = vmatprep.subr.mxu0 0.0
    %75 = vmatpush1.msra.mxu0 0.0
    %76 = vmatprep.subr.mxu0 0.0
    %77 = vmatpush1.msra.mxu0 0.0
    %78 = vmatprep.subr.mxu0 0.0
    %79 = vmatpush1.msra.mxu0 0.0
    %80 = vmatprep.subr.mxu0 0.0
    %81 = vmatpush1.msra.mxu0 0.0
    %82 = vmatprep.subr.mxu0 0.0
    %83 = vmatpush1.msra.mxu0 0.0
    %84 = vmatprep.subr.mxu0 0.0
    %85 = vmatpush1.msra.mxu0 0.0
    %86 = vmatprep.subr.mxu0 0.0
    %87 = vmatpush1.msra.mxu0 %v54
    %88 = vmatprep.subr.mxu0 0.0
    %89 = vmatpush1.msra.mxu0 %v53
    %90 = vmatprep.subr.mxu0 0.0
    %91 = vmatpush1.msra.mxu0 %v52
    %92 = vmatprep.subr.mxu0 0.0
    %93 = vmatpush1.msra.mxu0 %v51
    %94 = vmatprep.subr.mxu0 0.0
    %95 = vmatpush2.msra.mxu0 0.0
    %96 = vmatprep.subr.mxu0 0.0
    %97 = vmatpush2.msra.mxu0 0.0
    %98 = vmatprep.subr.mxu0 0.0
    %99 = vmatpush2.msra.mxu0 0.0
    %100 = vmatprep.subr.mxu0 0.0
    %101 = vmatpush2.msra.mxu0 0.0
    %102 = vmatprep.subr.mxu0 0.0
    %103 = vmatpush2.msra.mxu0 0.0
    %104 = vmatprep.subr.mxu0 0.0
    %105 = vmatpush2.msra.mxu0 0.0
    %106 = vmatprep.subr.mxu0 0.0
    %107 = vmatpush2.msra.mxu0 0.0
    %108 = vmatprep.subr.mxu0 0.0
    %109 = vmatpush2.msra.mxu0 0.0
    %110 = vmatprep.subr.mxu0 0.0
    %111 = vmatpush2.msra.mxu0 0.0
    %112 = vmatprep.subr.mxu0 0.0
    %113 = vmatpush2.msra.mxu0 0.0
    %114 = vmatprep.subr.mxu0 0.0
    %115 = vmatpush2.msra.mxu0 0.0
    %116 = vmatprep.subr.mxu0 0.0
    %117 = vmatpush2.msra.mxu0 0.0
    %118 = vmatprep.subr.mxu0 0.0
    %119 = vmatpush2.msra.mxu0 0.0
    %120 = vmatprep.subr.mxu0 0.0
    %121 = vmatpush2.msra.mxu0 0.0
    %122 = vmatprep.subr.mxu0 0.0
    %123 = vmatpush2.msra.mxu0 0.0
    %124 = vmatprep.subr.mxu0 0.0
    %125 = vmatpush2.msra.mxu0 0.0
    %126 = vmatprep.mubr.f32.mxu0 0.0
    %127 = vmatmul.mubr.f32.gmra.mxu0 %v57
    %v128 = vpop.f32.mrf.mxu0
    %v129 = vadd.f32 0.0, %v128
    %v130 = vpop.f32.mrf.mxu0
    %131 = vmatprep.mubr.f32.mxu0 0.0
    %132 = vmatmul.mubr.f32.gmra.mxu0 %v60
    %v133 = vpop.f32.mrf.mxu0
    %v134 = vadd.f32 0.0, %v133
    %v135 = vpop.f32.mrf.mxu0
    %136 = vdwg.mxu0
    %v137 = vadd.f32 %v47, %v129
    %v138 = vadd.f32 %v48, %v134
    %vm139 = vcmask 785408
    %140 = vst.msk [vmem:[#allocation2] sm:$0xff] %vm139, %v137
    %141 = vst.msk [vmem:[#allocation2 + $0x8] sm:$0xff] %vm139, %v138
    // Predicated region
    $region22: #{tpu_custom_call.1} parent=1 // pred_check
      %p142 = pneg %p40
    $region23: #{tpu_custom_call.1} parent=1 // pred_check_branch
      %144 = sbr.rel (%p142) target = $region25
    $region24: #{tpu_custom_call.1} parent=1 // pred_region
      %v145 = vld [vmem:[#allocation2] sm:$0xff]
      %v146 = vld [vmem:[#allocation2 + $0x8] sm:$0xff]
      %147 = vst.msk [vmem:[#allocation8] sm:$0xff] %vm139, %v145
      %148 = vst.msk [vmem:[#allocation8 + $0x8] sm:$0xff] %vm139, %v146
    $region25: #{tpu_custom_call.1} parent=1 // pred_fallthru
      _
    // Predicated region
    $region26: #{tpu_custom_call.1} parent=1 // pred_check
      _
    $region27: #{tpu_custom_call.1} parent=1 // pred_check_branch
      %150 = sbr.rel (0) target = $region29
    $region28: #{tpu_custom_call.1} parent=1 // pred_region
      %s152 = ssub.s32 256, 256
      %153 = vsyncadd [#allocation5], %s152
      %s154 = sshll.u32 [#allocation8], 4
      %s155 = int_to_ptr.vmem [resolvable:$true] %s154
      %160 = dma.vmem_to_hbm [thread:$0]  %s155, 256, %s2, [#allocation5], 128, 128, 8
    $region29: #{tpu_custom_call.1} parent=1 // pred_fallthru
      _
    // Predicated region
    $region30: #{tpu_custom_call.1} parent=1 // pred_check
      _
    $region31: #{tpu_custom_call.1} parent=1 // pred_check_branch
      %162 = sbr.rel (0) target = $region33
    $region32: #{tpu_custom_call.1} parent=1 // pred_region
      %163 = dma.done [#allocation5], 256
    $region33: #{tpu_custom_call.1} parent=1 // pred_fallthru
      _
    %164 = vsyncpa [#allocation4], 1
    %165 = vsyncpa [#allocation7], 1
    %166 = vsyncpa [#allocation5], 1

</llo_original>
